<compile_context>
chip_gen: v7x
topology: tpu7x:2x2x1
jax: 0.10.0
libtpu: 0.0.40
codegen_flags: <defaults>
</compile_context>

<pallas_src>
import functools
import math

import jax
import jax.numpy as jnp
from jax.experimental import pallas as pl
from jax.experimental.pallas import tpu as pltpu

STATE_DIM = 8
ACTION_DIM = 4
HIDDEN_DIM = 32
VALUE_HIDDEN = HIDDEN_DIM // 2
SMOOTHING = 0.9                    # SafetyFilter temporal smoothing
LN_EPS = 1e-5                      # nn.LayerNorm default eps
ACTION_STD_INIT = 0.5
VEL_LIMIT = 20.0
ANG_LIMIT = 3.14
YAW_BOUND = ANG_LIMIT / VEL_LIMIT  # per-channel clamp for channel 3

# ---- packed-weight slab row offsets (all sections start 8-aligned) ----------
_W1_ROWS = HIDDEN_DIM + 8          # 32 rows of w1.T + altitude selector row (+ pad)
_W1_R = 0                          # rows 0..31 = w1.T, row 32 = one-hot(altitude)
_W2_R = 40
_WH_R = 72                         # fused [action_mean ; value_hidden] weights (20 rows)
_WV2_R = 96                        # value output weight column (16 rows)
_B1_R = 112
_B2_R = 144
_BH_R = 176
_BV2_R = 200
_LNG_R = 208
_LNB_R = 240
_PREV_R = 272
SLAB_ROWS = 280
OUT_ROWS = 2 * ACTION_DIM + 1      # safe action | action_mean | value

_LANE = 128
_VMEM_ROWS_ESTIMATE = 240          # ~f32 rows of live per-lane intermediates in the body


def _cdiv(a, b):
    return -(-a // b)


def _round_up(x, m):
    return _cdiv(x, m) * m


def _choose_batch_tiling(batch, max_tile=32768, min_split=8192):
    """Adaptive batch tiling.

    - Big tiles (up to max_tile) amortize the ~0.35us fixed grid-step cost.
    - tb = round_up(cdiv(B, n_tiles), 128) bounds padding waste to <128/tile.
    - For large batches force >=2 (even) grid steps so the 'parallel' batch
      axis can shard across v7x's two TensorCores instead of one giant tile.
    """
    batch = max(int(batch), 1)
    n = _cdiv(batch, max_tile)
    if batch >= 2 * min_split:
        if n < 2:
            n = 2
        elif n % 2:
            n += 1
    tb = _round_up(_cdiv(batch, n), _LANE)
    return tb, n * tb, n


def _policy_kernel(x_ref, w_ref, out_ref):
    """x_ref: (TB, STATE_DIM), w_ref: (SLAB_ROWS, HIDDEN_DIM), out_ref: (OUT_ROWS, TB)."""
    x = x_ref[...]                                                       # (TB, 8)

    # --- layer 1 (+ fused altitude extraction): (40,8) x (TB,8)^T -> (40,TB) ---
    w1e = w_ref[_W1_R:_W1_R + _W1_ROWS, 0:STATE_DIM]                    # (40, 8)
    h1e = jax.lax.dot_general(w1e, x, (((1,), (1,)), ((), ())),
                              preferred_element_type=jnp.float32)        # (40, TB)
    b1 = w_ref[_B1_R:_B1_R + HIDDEN_DIM, 0:1]                            # (32, 1)
    h1 = jnp.maximum(h1e[0:HIDDEN_DIM, :] + b1, 0.0)                     # (32, TB)
    altitude = h1e[HIDDEN_DIM:HIDDEN_DIM + 1, :]                         # (1, TB) = state[:,2]

    # --- layer 2: Linear -> ReLU ---
    w2 = w_ref[_W2_R:_W2_R + HIDDEN_DIM, 0:HIDDEN_DIM]                   # (32, 32)
    b2 = w_ref[_B2_R:_B2_R + HIDDEN_DIM, 0:1]
    h2 = jnp.maximum(jnp.dot(w2, h1, preferred_element_type=jnp.float32) + b2, 0.0)

    # --- one-pass LayerNorm: both reductions independent (can overlap) ---
    inv_n = 1.0 / HIDDEN_DIM
    mu = jnp.sum(h2, axis=0, keepdims=True) * inv_n                      # (1, TB)
    ex2 = jnp.sum(h2 * h2, axis=0, keepdims=True) * inv_n
    var = jnp.maximum(ex2 - mu * mu, 0.0)
    g = w_ref[_LNG_R:_LNG_R + HIDDEN_DIM, 0:1]
    beta = w_ref[_LNB_R:_LNB_R + HIDDEN_DIM, 0:1]
    feat = (h2 - mu) * jax.lax.rsqrt(var + LN_EPS) * g + beta            # (32, TB)

    # --- fused heads: [action_mean ; value_hidden] in one matmul ---
    nh = ACTION_DIM + VALUE_HIDDEN                                       # 20
    wh = w_ref[_WH_R:_WH_R + nh, 0:HIDDEN_DIM]                           # (20, 32)
    bh = w_ref[_BH_R:_BH_R + nh, 0:1]
    heads = jnp.dot(wh, feat, preferred_element_type=jnp.float32) + bh   # (20, TB)
    a_mean = heads[0:ACTION_DIM, :]                                      # (4, TB)
    v1 = jnp.maximum(heads[ACTION_DIM:, :], 0.0)                         # (16, TB)

    # --- value output: (16,1) broadcast-mul + sublane reduce ---
    wv2 = w_ref[_WV2_R:_WV2_R + VALUE_HIDDEN, 0:1]                       # (16, 1)
    bv2 = w_ref[_BV2_R:_BV2_R + 1, 0:1]                                  # (1, 1)
    value = jnp.sum(wv2 * v1, axis=0, keepdims=True) + bv2               # (1, TB)

    # --- deterministic action + tanh squash (use_tanh=True) ---
    act = jnp.tanh(a_mean)

    # --- SafetyFilter (clamp bounds baked as compile-time constants) ---
    ch = jax.lax.broadcasted_iota(jnp.int32, act.shape, 0)               # channel index
    hi = jnp.where(ch == 3, YAW_BOUND, 1.0)                              # vel +-1, yaw +-0.157
    safe = jnp.clip(act, -hi, hi)
    prev = w_ref[_PREV_R:_PREV_R + ACTION_DIM, 0:1]                      # (4, 1)
    safe = SMOOTHING * prev + (1.0 - SMOOTHING) * safe
    low_alt = (altitude < 5.0) & (ch == 2)
    safe = jnp.where(low_alt, jnp.clip(safe, -0.5, 0.5), safe)

    # --- single lane-dense output slab ---
    out_ref[0:ACTION_DIM, :] = safe
    out_ref[ACTION_DIM:2 * ACTION_DIM, :] = a_mean
    out_ref[2 * ACTION_DIM:, :] = value


def pack_params(p):
    """Pack all weights/biases/LN/prev into one (SLAB_ROWS, HIDDEN_DIM) slab.
    Weights are stored transposed (out_dim, in_dim) for the W @ X layout.
    Call ONCE (outside the per-step path) and reuse the slab across calls."""
    slab = jnp.zeros((SLAB_ROWS, HIDDEN_DIM), jnp.float32)
    slab = slab.at[_W1_R:_W1_R + HIDDEN_DIM, 0:STATE_DIM].set(p['w1'].T)
    slab = slab.at[_W1_R + HIDDEN_DIM, 2].set(1.0)        # altitude selector row
    slab = slab.at[_W2_R:_W2_R + HIDDEN_DIM, 0:HIDDEN_DIM].set(p['w2'].T)
    slab = slab.at[_WH_R:_WH_R + ACTION_DIM, 0:HIDDEN_DIM].set(p['wa'].T)
    slab = slab.at[_WH_R + ACTION_DIM:_WH_R + ACTION_DIM + VALUE_HIDDEN,
                   0:HIDDEN_DIM].set(p['wv1'].T)
    slab = slab.at[_WV2_R:_WV2_R + VALUE_HIDDEN, 0:1].set(p['wv2'].reshape(VALUE_HIDDEN, 1))
    slab = slab.at[_B1_R:_B1_R + HIDDEN_DIM, 0:1].set(p['b1'].reshape(HIDDEN_DIM, 1))
    slab = slab.at[_B2_R:_B2_R + HIDDEN_DIM, 0:1].set(p['b2'].reshape(HIDDEN_DIM, 1))
    slab = slab.at[_BH_R:_BH_R + ACTION_DIM, 0:1].set(p['ba'].reshape(ACTION_DIM, 1))
    slab = slab.at[_BH_R + ACTION_DIM:_BH_R + ACTION_DIM + VALUE_HIDDEN,
                   0:1].set(p['bv1'].reshape(VALUE_HIDDEN, 1))
    slab = slab.at[_BV2_R:_BV2_R + 1, 0:1].set(p['bv2'].reshape(1, 1))
    slab = slab.at[_LNG_R:_LNG_R + HIDDEN_DIM, 0:1].set(p['ln_g'].reshape(HIDDEN_DIM, 1))
    slab = slab.at[_LNB_R:_LNB_R + HIDDEN_DIM, 0:1].set(p['ln_b'].reshape(HIDDEN_DIM, 1))
    slab = slab.at[_PREV_R:_PREV_R + ACTION_DIM, 0:1].set(p['prev'].reshape(ACTION_DIM, 1))
    return slab


@functools.partial(jax.jit, static_argnames=("max_tile",))
def execution_policy_forward(state, slab, log_std, *, max_tile=32768):
    """Deterministic forward; returns (action, info) like the nn.Module.
    `slab` = pack_params(params) (packed once, reused), `log_std` = params['log_std'].
    # TODO(synk): stochastic rsample path (Normal noise + tanh log-prob correction)
    # is not implemented; this mirrors forward(state, deterministic=True).
    """
    B = state.shape[0]
    state = state.astype(jnp.float32)

    tb, b_pad, n_tiles = _choose_batch_tiling(B, max_tile=max_tile)
    x_p = state if b_pad == B else jnp.pad(state, ((0, b_pad - B), (0, 0)))

    # Explicit VMEM limit so big tiles compile on v5e (16 MiB default scoped
    # VMEM) while staying comfortably under v7x's 64 MiB physical VMEM.
    vmem_limit = int(min(100 * 2**20,
                         max(32 * 2**20, int(1.3 * _VMEM_ROWS_ESTIMATE * tb * 4))))

    out = pl.pallas_call(
        _policy_kernel,
        grid=(n_tiles,),
        in_specs=[
            pl.BlockSpec((tb, STATE_DIM), lambda i: (i, 0)),           # streamed batch tile
            pl.BlockSpec((SLAB_ROWS, HIDDEN_DIM), lambda i: (0, 0)),   # resident weight slab
        ],
        out_specs=pl.BlockSpec((OUT_ROWS, tb), lambda i: (0, i)),
        out_shape=jax.ShapeDtypeStruct((OUT_ROWS, b_pad), jnp.float32),
        compiler_params=pltpu.CompilerParams(
            dimension_semantics=("parallel",),      # megacore-shard batch axis (v7x)
            vmem_limit_bytes=vmem_limit,
        ),
    )(x_p, slab)

    # Under jit these slices + transposes fuse into one pass over the 9xB slab.
    action = out[0:ACTION_DIM, :B].T                    # (B, 4)
    a_mean = out[ACTION_DIM:2 * ACTION_DIM, :B].T       # (B, 4)
    value = out[2 * ACTION_DIM, :B]                     # (B,)

    info = {
        'value': value,
        'log_prob': jnp.zeros((B,), jnp.float32),       # deterministic => zeros
        'action_mean': a_mean,
        'action_std': jnp.exp(log_std),
        # The PyTorch module builds info AFTER the safety filter, so
        # 'pre_safety_action' is (despite the name) the filtered action there too.
        'pre_safety_action': action,
        # SafetyFilter buffer update (prev_action = safe_action.detach()); caller
        # threads this back into params['prev'] / the slab for the next step.
        # TODO(synk): per-sample prev_action after the first call would need a
        # streamed (ACTION_DIM, B) input instead of the (1, ACTION_DIM) buffer.
        'new_prev_action': jax.lax.stop_gradient(action),
    }
    return action, info


def init_params(key):
    ortho = jax.nn.initializers.orthogonal(scale=math.sqrt(2.0))
    ks = jax.random.split(key, 5)
    params = {
        'w1': ortho(ks[0], (STATE_DIM, HIDDEN_DIM), jnp.float32),
        'b1': jnp.zeros((1, HIDDEN_DIM), jnp.float32),
        'w2': ortho(ks[1], (HIDDEN_DIM, HIDDEN_DIM), jnp.float32),
        'b2': jnp.zeros((1, HIDDEN_DIM), jnp.float32),
        'ln_g': jnp.ones((1, HIDDEN_DIM), jnp.float32),
        'ln_b': jnp.zeros((1, HIDDEN_DIM), jnp.float32),
        'wa': ortho(ks[2], (HIDDEN_DIM, ACTION_DIM), jnp.float32),
        'ba': jnp.zeros((1, ACTION_DIM), jnp.float32),
        'wv1': ortho(ks[3], (HIDDEN_DIM, VALUE_HIDDEN), jnp.float32),
        'bv1': jnp.zeros((1, VALUE_HIDDEN), jnp.float32),
        'wv2': ortho(ks[4], (VALUE_HIDDEN, 1), jnp.float32),
        'bv2': jnp.zeros((1, 1), jnp.float32),
        'log_std': jnp.full((ACTION_DIM,), math.log(ACTION_STD_INIT), jnp.float32),
        'prev': jnp.zeros((1, ACTION_DIM), jnp.float32),   # SafetyFilter.prev_action buffer
    }
    return params


def forward_ref(state, p):
    """Pure-JAX reference mirroring the PyTorch forward (deterministic)."""
    h1 = jnp.maximum(state @ p['w1'] + p['b1'], 0.0)
    h2 = jnp.maximum(h1 @ p['w2'] + p['b2'], 0.0)
    mu = h2.mean(-1, keepdims=True)
    var = ((h2 - mu) ** 2).mean(-1, keepdims=True)
    feat = (h2 - mu) / jnp.sqrt(var + LN_EPS) * p['ln_g'] + p['ln_b']
    a_mean = feat @ p['wa'] + p['ba']
    act = jnp.tanh(a_mean)
    col = jnp.arange(ACTION_DIM)[None, :]
    hi = jnp.where(col == 3, YAW_BOUND, 1.0)
    safe = jnp.clip(act, -hi, hi)
    safe = SMOOTHING * p['prev'] + (1.0 - SMOOTHING) * safe
    altitude = state[:, 2:3]
    safe = jnp.where((altitude < 5.0) & (col == 2),
                     jnp.clip(safe, -0.5, 0.5), safe)
    v1 = jnp.maximum(feat @ p['wv1'] + p['bv1'], 0.0)
    value = (v1 @ p['wv2'] + p['bv2'])[:, 0]
    return safe, a_mean, value


if __name__ == "__main__":
    key = jax.random.PRNGKey(0)
    pkey, skey = jax.random.split(key)
    params = init_params(pkey)
    slab = pack_params(params)      # packed once, hoisted out of the per-call path

    B = 8
    state = jax.random.normal(skey, (B, STATE_DIM), jnp.float32) * 3.0

    action, info = execution_policy_forward(state, slab, params['log_std'])
    jax.block_until_ready(action)
    jax.block_until_ready(info['value'])

    ref_action, ref_mean, ref_value = forward_ref(state, params)
    assert jnp.allclose(action, ref_action, atol=1e-4), "action mismatch"
    assert jnp.allclose(info['action_mean'], ref_mean, atol=1e-4), "mean mismatch"
    assert jnp.allclose(info['value'], ref_value, atol=1e-4), "value mismatch"

    print("KERNEL_OK")
</pallas_src>

<mosaic_0001>
module attributes {stable_mosaic.version = 11 : i64} {
  func.func @_policy_kernel(%arg0: i32, %arg1: memref<128x8xf32, #tpu.memory_space<vmem>>, %arg2: memref<280x32xf32, #tpu.memory_space<vmem>>, %arg3: memref<9x128xf32, #tpu.memory_space<vmem>>) attributes {dimension_semantics = [#tpu.dimension_semantics<parallel>], iteration_bounds = array<i64: 1>, scalar_prefetch = 0 : i64, scratch_operands = 0 : i64, tpu.core_type = #tpu.core_type<tc>, window_params = [{transform_indices = @transform_0, window_bounds = array<i64: 128, 8>}, {pipeline_mode = #tpu.pipeline_mode<synchronous>, transform_indices = @transform_1, window_bounds = array<i64: 280, 32>}, {transform_indices = @transform_2, window_bounds = array<i64: 9, 128>}]} {
    %c0 = arith.constant 0 : index
    %c0_0 = arith.constant 0 : index
    %0 = vector.load %arg1[%c0, %c0_0] : memref<128x8xf32, #tpu.memory_space<vmem>>, vector<128x8xf32>
    %c0_1 = arith.constant 0 : index
    %c0_2 = arith.constant 0 : index
    %1 = vector.load %arg2[%c0_1, %c0_2] : memref<280x32xf32, #tpu.memory_space<vmem>>, vector<40x8xf32>
    %cst = arith.constant dense<0.000000e+00> : vector<40x128xf32>
    %2 = tpu.matmul %1, %0, %cst {dimension_numbers = #tpu.dot_dimension_numbers<[1], [1], [0], [0], [0, 0, 1, 0], [], []>} : vector<40x8xf32>, vector<128x8xf32>, vector<40x128xf32> -> vector<40x128xf32>
    %c112 = arith.constant 112 : index
    %c0_3 = arith.constant 0 : index
    %3 = vector.load %arg2[%c112, %c0_3] : memref<280x32xf32, #tpu.memory_space<vmem>>, vector<32x1xf32>
    %4 = vector.extract_strided_slice %2 {offsets = [0, 0], sizes = [32, 128], strides = [1, 1]} : vector<40x128xf32> to vector<32x128xf32>
    %5 = vector.broadcast %3 : vector<32x1xf32> to vector<32x128xf32>
    %6 = arith.addf %4, %5 : vector<32x128xf32>
    %cst_4 = arith.constant 0.000000e+00 : f32
    %7 = vector.broadcast %cst_4 : f32 to vector<32x128xf32>
    %8 = arith.maximumf %6, %7 : vector<32x128xf32>
    %9 = vector.extract_strided_slice %2 {offsets = [32, 0], sizes = [1, 128], strides = [1, 1]} : vector<40x128xf32> to vector<1x128xf32>
    %c40 = arith.constant 40 : index
    %c0_5 = arith.constant 0 : index
    %10 = vector.load %arg2[%c40, %c0_5] : memref<280x32xf32, #tpu.memory_space<vmem>>, vector<32x32xf32>
    %c144 = arith.constant 144 : index
    %c0_6 = arith.constant 0 : index
    %11 = vector.load %arg2[%c144, %c0_6] : memref<280x32xf32, #tpu.memory_space<vmem>>, vector<32x1xf32>
    %cst_7 = arith.constant dense<0.000000e+00> : vector<32x128xf32>
    %12 = tpu.matmul %10, %8, %cst_7 {dimension_numbers = #tpu.dot_dimension_numbers<[1], [0], [0], [1], [0, 0, 1, 1], [], []>} : vector<32x32xf32>, vector<32x128xf32>, vector<32x128xf32> -> vector<32x128xf32>
    %13 = vector.broadcast %11 : vector<32x1xf32> to vector<32x128xf32>
    %14 = arith.addf %12, %13 : vector<32x128xf32>
    %cst_8 = arith.constant 0.000000e+00 : f32
    %15 = vector.broadcast %cst_8 : f32 to vector<32x128xf32>
    %16 = arith.maximumf %14, %15 : vector<32x128xf32>
    %cst_9 = arith.constant dense<0.000000e+00> : vector<128xf32>
    %17 = vector.multi_reduction <add>, %16, %cst_9 [0] : vector<32x128xf32> to vector<128xf32>
    %18 = vector.shape_cast %17 : vector<128xf32> to vector<1x128xf32>
    %cst_10 = arith.constant 3.125000e-02 : f32
    %19 = vector.broadcast %cst_10 : f32 to vector<1x128xf32>
    %20 = arith.mulf %18, %19 : vector<1x128xf32>
    %21 = arith.mulf %16, %16 : vector<32x128xf32>
    %cst_11 = arith.constant dense<0.000000e+00> : vector<128xf32>
    %22 = vector.multi_reduction <add>, %21, %cst_11 [0] : vector<32x128xf32> to vector<128xf32>
    %23 = vector.shape_cast %22 : vector<128xf32> to vector<1x128xf32>
    %cst_12 = arith.constant 3.125000e-02 : f32
    %24 = vector.broadcast %cst_12 : f32 to vector<1x128xf32>
    %25 = arith.mulf %23, %24 : vector<1x128xf32>
    %26 = arith.mulf %20, %20 : vector<1x128xf32>
    %27 = arith.subf %25, %26 : vector<1x128xf32>
    %cst_13 = arith.constant 0.000000e+00 : f32
    %28 = vector.broadcast %cst_13 : f32 to vector<1x128xf32>
    %29 = arith.maximumf %27, %28 : vector<1x128xf32>
    %c208 = arith.constant 208 : index
    %c0_14 = arith.constant 0 : index
    %30 = vector.load %arg2[%c208, %c0_14] : memref<280x32xf32, #tpu.memory_space<vmem>>, vector<32x1xf32>
    %c240 = arith.constant 240 : index
    %c0_15 = arith.constant 0 : index
    %31 = vector.load %arg2[%c240, %c0_15] : memref<280x32xf32, #tpu.memory_space<vmem>>, vector<32x1xf32>
    %32 = vector.broadcast %20 : vector<1x128xf32> to vector<32x128xf32>
    %33 = arith.subf %16, %32 : vector<32x128xf32>
    %cst_16 = arith.constant 9.99999974E-6 : f32
    %34 = vector.broadcast %cst_16 : f32 to vector<1x128xf32>
    %35 = arith.addf %29, %34 : vector<1x128xf32>
    %36 = math.rsqrt %35 : vector<1x128xf32>
    %37 = vector.broadcast %36 : vector<1x128xf32> to vector<32x128xf32>
    %38 = arith.mulf %33, %37 : vector<32x128xf32>
    %39 = vector.broadcast %30 : vector<32x1xf32> to vector<32x128xf32>
    %40 = arith.mulf %38, %39 : vector<32x128xf32>
    %41 = vector.broadcast %31 : vector<32x1xf32> to vector<32x128xf32>
    %42 = arith.addf %40, %41 : vector<32x128xf32>
    %c72 = arith.constant 72 : index
    %c0_17 = arith.constant 0 : index
    %43 = vector.load %arg2[%c72, %c0_17] : memref<280x32xf32, #tpu.memory_space<vmem>>, vector<20x32xf32>
    %c176 = arith.constant 176 : index
    %c0_18 = arith.constant 0 : index
    %44 = vector.load %arg2[%c176, %c0_18] : memref<280x32xf32, #tpu.memory_space<vmem>>, vector<20x1xf32>
    %cst_19 = arith.constant dense<0.000000e+00> : vector<20x128xf32>
    %45 = tpu.matmul %43, %42, %cst_19 {dimension_numbers = #tpu.dot_dimension_numbers<[1], [0], [0], [1], [0, 0, 1, 1], [], []>} : vector<20x32xf32>, vector<32x128xf32>, vector<20x128xf32> -> vector<20x128xf32>
    %46 = vector.broadcast %44 : vector<20x1xf32> to vector<20x128xf32>
    %47 = arith.addf %45, %46 : vector<20x128xf32>
    %48 = vector.extract_strided_slice %47 {offsets = [0, 0], sizes = [4, 128], strides = [1, 1]} : vector<20x128xf32> to vector<4x128xf32>
    %49 = vector.extract_strided_slice %47 {offsets = [4, 0], sizes = [16, 128], strides = [1, 1]} : vector<20x128xf32> to vector<16x128xf32>
    %cst_20 = arith.constant 0.000000e+00 : f32
    %50 = vector.broadcast %cst_20 : f32 to vector<16x128xf32>
    %51 = arith.maximumf %49, %50 : vector<16x128xf32>
    %c96 = arith.constant 96 : index
    %c0_21 = arith.constant 0 : index
    %52 = vector.load %arg2[%c96, %c0_21] : memref<280x32xf32, #tpu.memory_space<vmem>>, vector<16x1xf32>
    %c200 = arith.constant 200 : index
    %c0_22 = arith.constant 0 : index
    %53 = vector.load %arg2[%c200, %c0_22] : memref<280x32xf32, #tpu.memory_space<vmem>>, vector<1x1xf32>
    %54 = vector.broadcast %52 : vector<16x1xf32> to vector<16x128xf32>
    %55 = arith.mulf %54, %51 : vector<16x128xf32>
    %cst_23 = arith.constant dense<0.000000e+00> : vector<128xf32>
    %56 = vector.multi_reduction <add>, %55, %cst_23 [0] : vector<16x128xf32> to vector<128xf32>
    %57 = vector.shape_cast %56 : vector<128xf32> to vector<1x128xf32>
    %58 = vector.broadcast %53 : vector<1x1xf32> to vector<1x128xf32>
    %59 = arith.addf %57, %58 : vector<1x128xf32>
    %60 = math.tanh %48 : vector<4x128xf32>
    %61 = tpu.iota {dimensions = array<i32: 0>} : vector<4x128xi32>
    %c3_i32 = arith.constant 3 : i32
    %62 = vector.broadcast %c3_i32 : i32 to vector<4x128xi32>
    %63 = arith.cmpi eq, %61, %62 : vector<4x128xi32>
    %cst_24 = arith.constant 1.570000e-01 : f32
    %cst_25 = arith.constant 1.000000e+00 : f32
    %64 = vector.broadcast %cst_24 : f32 to vector<4x128xf32>
    %65 = vector.broadcast %cst_25 : f32 to vector<4x128xf32>
    %66 = arith.select %63, %64, %65 : vector<4x128xi1>, vector<4x128xf32>
    %cst_26 = arith.constant 0.000000e+00 : f32
    %67 = vector.broadcast %cst_26 : f32 to vector<4x128xf32>
    %68 = arith.subf %67, %66 : vector<4x128xf32>
    %69 = arith.maximumf %68, %60 : vector<4x128xf32>
    %70 = arith.minimumf %66, %69 : vector<4x128xf32>
    %c272 = arith.constant 272 : index
    %c0_27 = arith.constant 0 : index
    %71 = vector.load %arg2[%c272, %c0_27] : memref<280x32xf32, #tpu.memory_space<vmem>>, vector<4x1xf32>
    %cst_28 = arith.constant 0.899999976 : f32
    %72 = vector.broadcast %cst_28 : f32 to vector<4x1xf32>
    %73 = arith.mulf %72, %71 : vector<4x1xf32>
    %cst_29 = arith.constant 1.000000e-01 : f32
    %74 = vector.broadcast %cst_29 : f32 to vector<4x128xf32>
    %75 = arith.mulf %74, %70 : vector<4x128xf32>
    %76 = vector.broadcast %73 : vector<4x1xf32> to vector<4x128xf32>
    %77 = arith.addf %76, %75 : vector<4x128xf32>
    %cst_30 = arith.constant 5.000000e+00 : f32
    %78 = vector.broadcast %cst_30 : f32 to vector<1x128xf32>
    %79 = arith.cmpf olt, %9, %78 : vector<1x128xf32>
    %c2_i32 = arith.constant 2 : i32
    %80 = vector.broadcast %c2_i32 : i32 to vector<4x128xi32>
    %81 = arith.cmpi eq, %61, %80 : vector<4x128xi32>
    %82 = vector.broadcast %79 : vector<1x128xi1> to vector<4x128xi1>
    %83 = arith.andi %82, %81 : vector<4x128xi1>
    %cst_31 = arith.constant -5.000000e-01 : f32
    %cst_32 = arith.constant 5.000000e-01 : f32
    %84 = vector.broadcast %cst_31 : f32 to vector<4x128xf32>
    %85 = arith.maximumf %84, %77 : vector<4x128xf32>
    %86 = vector.broadcast %cst_32 : f32 to vector<4x128xf32>
    %87 = arith.minimumf %86, %85 : vector<4x128xf32>
    %88 = arith.select %83, %87, %77 : vector<4x128xi1>, vector<4x128xf32>
    %c0_33 = arith.constant 0 : index
    %c0_34 = arith.constant 0 : index
    %89 = vector.load %arg3[%c0_33, %c0_34] : memref<9x128xf32, #tpu.memory_space<vmem>>, vector<4x128xf32>
    tpu.vector_store %arg3[%c0_33, %c0_34], %88 {strides = array<i32>} : memref<9x128xf32, #tpu.memory_space<vmem>>, vector<4x128xf32>,
    %c4 = arith.constant 4 : index
    %c0_35 = arith.constant 0 : index
    %90 = vector.load %arg3[%c4, %c0_35] : memref<9x128xf32, #tpu.memory_space<vmem>>, vector<4x128xf32>
    tpu.vector_store %arg3[%c4, %c0_35], %48 {strides = array<i32>} : memref<9x128xf32, #tpu.memory_space<vmem>>, vector<4x128xf32>,
    %c8 = arith.constant 8 : index
    %c0_36 = arith.constant 0 : index
    %91 = vector.load %arg3[%c8, %c0_36] : memref<9x128xf32, #tpu.memory_space<vmem>>, vector<1x128xf32>
    tpu.vector_store %arg3[%c8, %c0_36], %59 {strides = array<i32>} : memref<9x128xf32, #tpu.memory_space<vmem>>, vector<1x128xf32>,
    return
  }
  func.func @transform_0(%arg0: i32) -> (i32, i32) {
    %c0_i32 = arith.constant 0 : i32
    %c0_i32_0 = arith.constant 0 : i32
    return %arg0, %c0_i32 : i32, i32
  }
  func.func @transform_1(%arg0: i32) -> (i32, i32) {
    %c0_i32 = arith.constant 0 : i32
    %c0_i32_0 = arith.constant 0 : i32
    %c0_i32_1 = arith.constant 0 : i32
    return %c0_i32, %c0_i32_0 : i32, i32
  }
  func.func @transform_2(%arg0: i32) -> (i32, i32) {
    %c0_i32 = arith.constant 0 : i32
    %c0_i32_0 = arith.constant 0 : i32
    return %c0_i32, %arg0 : i32, i32
  }
}

</mosaic_0001>

<llo_original>
// kernel: execution_policy_forward.1
$region0: #{execution_policy_forward.1}
  #allocation0 [shape = 'u32[]', space=smem, size = 0x4, offset = 0x4, fixed_abs, tag = 'smem constant byte address 0x4 - core index']
  #allocation1 [shape = 'u32[144,128]{1,0:T(1,128)}', space=vmem, size = 0x12000, scoped, tag = 'internal scratch']
  %s0 = inlined_call_operand.vmem [shape: f32[128,8], index: 0, kind: input, shape index: {}]
  %s1 = inlined_call_operand.vmem [shape: f32[280,32], index: 1, kind: input, shape index: {}]
  %s2 = inlined_call_operand.vmem [shape: f32[9,128], index: 2, kind: output, shape index: {}]
  %s3 = sld [smem:[#allocation0]]
  $region18: #{execution_policy_forward.1} parent=0
    _
  %s5 = ssub.s32 1, %s3
  %s6 = scalar_select 0, %s5, %s3
  // Predicated region
  $region2: #{execution_policy_forward.1} parent=0 // pred_check
    _
  $region3: #{execution_policy_forward.1} parent=0 // pred_check_branch
    %8 = sbr.rel (0) target = $region5
  $region4: #{execution_policy_forward.1} parent=0 // pred_region
    _
  $region5: #{execution_policy_forward.1} parent=0 // pred_fallthru
    _
  // Predicated region
  $region6: #{execution_policy_forward.1} parent=0 // pred_check
    _
  $region7: #{execution_policy_forward.1} parent=0 // pred_check_branch
    %10 = sbr.rel (0) target = $region9
  $region8: #{execution_policy_forward.1} parent=0 // pred_region
    _
  $region9: #{execution_policy_forward.1} parent=0 // pred_fallthru
    _
  %v11 = vld [vmem:[%s0] sm:$0xff]
  %v12 = vld [vmem:[%s0 + $0x8] sm:$0xff]
  %v13 = vld [vmem:[%s0 + $0x10] sm:$0xff]
  %v14 = vld [vmem:[%s0 + $0x18] sm:$0xff]
  %v15 = vld [vmem:[%s0 + $0x20] sm:$0xff]
  %v16 = vld [vmem:[%s0 + $0x28] sm:$0xff]
  %v17 = vld [vmem:[%s0 + $0x30] sm:$0xff]
  %v18 = vld [vmem:[%s0 + $0x38] sm:$0xff]
  %v19 = vld [vmem:[%s0 + $0x40] sm:$0xff]
  %v20 = vld [vmem:[%s0 + $0x48] sm:$0xff]
  %v21 = vld [vmem:[%s0 + $0x50] sm:$0xff]
  %v22 = vld [vmem:[%s0 + $0x58] sm:$0xff]
  %v23 = vld [vmem:[%s0 + $0x60] sm:$0xff]
  %v24 = vld [vmem:[%s0 + $0x68] sm:$0xff]
  %v25 = vld [vmem:[%s0 + $0x70] sm:$0xff]
  %v26 = vld [vmem:[%s0 + $0x78] sm:$0xff]
  %v27 = vld [vmem:[%s1] sm:$0xff]
  %v28 = vld [vmem:[%s1 + $0x8] sm:$0xff]
  %v29 = vld [vmem:[%s1 + $0x10] sm:$0xff]
  %v30 = vld [vmem:[%s1 + $0x18] sm:$0xff]
  %v31 = vld [vmem:[%s1 + $0x20] sm:$0xff]
  %vm32 = vcmask 64512
  %v34 = vsel %vm32, %v27, 0
  %v37 = vsel %vm32, %v28, 0
  %v40 = vsel %vm32, %v29, 0
  %v43 = vsel %vm32, %v30, 0
  %v46 = vsel %vm32, %v31, 0
  %v49 = vsel %vm32, %v11, 0
  %v52 = vsel %vm32, %v12, 0
  %v55 = vsel %vm32, %v13, 0
  %v58 = vsel %vm32, %v14, 0
  %v61 = vsel %vm32, %v15, 0
  %v64 = vsel %vm32, %v16, 0
  %v67 = vsel %vm32, %v17, 0
  %v70 = vsel %vm32, %v18, 0
  %v73 = vsel %vm32, %v19, 0
  %v76 = vsel %vm32, %v20, 0
  %v79 = vsel %vm32, %v21, 0
  %v82 = vsel %vm32, %v22, 0
  %v85 = vsel %vm32, %v23, 0
  %v88 = vsel %vm32, %v24, 0
  %v91 = vsel %vm32, %v25, 0
  %v94 = vsel %vm32, %v26, 0
  %96 = vmatprep.subr.mxu0 0.0
  %97 = vmatpush1.xpose.msra.mxu0 %v49
  %98 = vmatprep.subr.mxu0 0.0
  %99 = vmatpush1.xpose.msra.mxu0 %v52
  %100 = vmatprep.subr.mxu0 0.0
  %101 = vmatpush1.xpose.msra.mxu0 %v55
  %102 = vmatprep.subr.mxu0 0.0
  %103 = vmatpush1.xpose.msra.mxu0 %v58
  %104 = vmatprep.subr.mxu0 0.0
  %105 = vmatpush1.xpose.msra.mxu0 %v61
  %106 = vmatprep.subr.mxu0 0.0
  %107 = vmatpush1.xpose.msra.mxu0 %v64
  %108 = vmatprep.subr.mxu0 0.0
  %109 = vmatpush1.xpose.msra.mxu0 %v67
  %110 = vmatprep.subr.mxu0 0.0
  %111 = vmatpush1.xpose.msra.mxu0 %v70
  %112 = vmatprep.subr.mxu0 0.0
  %113 = vmatpush1.xpose.msra.mxu0 %v73
  %114 = vmatprep.subr.mxu0 0.0
  %115 = vmatpush1.xpose.msra.mxu0 %v76
  %116 = vmatprep.subr.mxu0 0.0
  %117 = vmatpush1.xpose.msra.mxu0 %v79
  %118 = vmatprep.subr.mxu0 0.0
  %119 = vmatpush1.xpose.msra.mxu0 %v82
  %120 = vmatprep.subr.mxu0 0.0
  %121 = vmatpush1.xpose.msra.mxu0 %v85
  %122 = vmatprep.subr.mxu0 0.0
  %123 = vmatpush1.xpose.msra.mxu0 %v88
  %124 = vmatprep.subr.mxu0 0.0
  %125 = vmatpush1.xpose.msra.mxu0 %v91
  %126 = vmatprep.subr.mxu0 0.0
  %127 = vmatpush1.xpose.msra.mxu0 %v94
  %128 = vmatprep.subr.mxu0 0.0
  %129 = vmatpush1.xpose.msra.mxu0 0.0
  %130 = vmatprep.subr.mxu0 0.0
  %131 = vmatpush1.xpose.msra.mxu0 0.0
  %132 = vmatprep.subr.mxu0 0.0
  %133 = vmatpush1.xpose.msra.mxu0 0.0
  %134 = vmatprep.subr.mxu0 0.0
  %135 = vmatpush1.xpose.msra.mxu0 0.0
  %136 = vmatprep.subr.mxu0 0.0
  %137 = vmatpush1.xpose.msra.mxu0 0.0
  %138 = vmatprep.subr.mxu0 0.0
  %139 = vmatpush1.xpose.msra.mxu0 0.0
  %140 = vmatprep.subr.mxu0 0.0
  %141 = vmatpush1.xpose.msra.mxu0 0.0
  %142 = vmatprep.subr.mxu0 0.0
  %143 = vmatpush1.xpose.msra.mxu0 0.0
  %144 = vmatprep.subr.mxu0 0.0
  %145 = vmatpush1.xpose.msra.mxu0 0.0
  %146 = vmatprep.subr.mxu0 0.0
  %147 = vmatpush1.xpose.msra.mxu0 0.0
  %148 = vmatprep.subr.mxu0 0.0
  %149 = vmatpush1.xpose.msra.mxu0 0.0
  %150 = vmatprep.subr.mxu0 0.0
  %151 = vmatpush1.xpose.msra.mxu0 0.0
  %152 = vmatprep.subr.mxu0 0.0
  %153 = vmatpush1.xpose.msra.mxu0 0.0
  %154 = vmatprep.subr.mxu0 0.0
  %155 = vmatpush1.xpose.msra.mxu0 0.0
  %156 = vmatprep.subr.mxu0 0.0
  %157 = vmatpush1.xpose.msra.mxu0 0.0
  %158 = vmatprep.subr.mxu0 0.0
  %159 = vmatpush1.xpose.msra.mxu0 0.0
  %160 = vmatprep.mubr.f32.mxu0 0.0
  %161 = vmatmul.mubr.f32.gmra.mrb[0].mxu0 %v34
  %v162 = vpop.f32.mrb[0].mxu0
  %v163 = vadd.f32 0.0, %v162
  %v164 = vpop.f32.mrb[0].mxu0
  %165 = vmatprep.mubr.f32.mxu0 0.0
  %166 = vmatmul.mubr.f32.gmra.mrb[0].mxu0 %v37
  %v167 = vpop.f32.mrb[0].mxu0
  %v168 = vadd.f32 0.0, %v167
  %v169 = vpop.f32.mrb[0].mxu0
  %170 = vmatprep.mubr.f32.mxu0 0.0
  %171 = vmatmul.mubr.f32.gmra.mrb[0].mxu0 %v40
  %v172 = vpop.f32.mrb[0].mxu0
  %v173 = vadd.f32 0.0, %v172
  %v174 = vpop.f32.mrb[0].mxu0
  %175 = vmatprep.mubr.f32.mxu0 0.0
  %176 = vmatmul.mubr.f32.gmra.mrb[0].mxu0 %v43
  %v177 = vpop.f32.mrb[0].mxu0
  %v178 = vadd.f32 0.0, %v177
  %v179 = vpop.f32.mrb[0].mxu0
  %180 = vmatprep.mubr.f32.mxu0 0.0
  %181 = vmatmul.mubr.f32.gmra.mrb[0].mxu0 %v46
  %v182 = vpop.f32.mrb[0].mxu0
  %v183 = vadd.f32 0.0, %v182
  %v184 = vpop.f32.mrb[0].mxu0
  %185 = vdwg.mxu0
  %v186 = vld [vmem:[%s1 + $0x70] sm:$0xff]
  %v187 = vld [vmem:[%s1 + $0x78] sm:$0xff]
  %v188 = vld [vmem:[%s1 + $0x80] sm:$0xff]
  %v189 = vld [vmem:[%s1 + $0x88] sm:$0xff]
  %191 = vset.pattern.permute.xlu0 0
  %192 = vperm.xlu0 %191, %v186
  %v193 = vpop.permute.xlu0 %192
  %196 = vset.pattern.permute.xlu0 0
  %197 = vperm.xlu0 %196, %v187
  %v198 = vpop.permute.xlu0 %197
  %201 = vset.pattern.permute.xlu0 0
  %202 = vperm.xlu0 %201, %v188
  %v203 = vpop.permute.xlu0 %202
  %206 = vset.pattern.permute.xlu0 0
  %207 = vperm.xlu0 %206, %v189
  %v208 = vpop.permute.xlu0 %207
  %v210 = vadd.f32 %v163, %v193
  %v211 = vadd.f32 %v168, %v198
  %v212 = vadd.f32 %v173, %v203
  %v213 = vadd.f32 %v178, %v208
  %v214 = vmax.f32 %v210, 0.0
  %v215 = vmax.f32 %v211, 0.0
  %v216 = vmax.f32 %v212, 0.0
  %v217 = vmax.f32 %v213, 0.0
  %v218 = vld [vmem:[%s1 + $0x28] sm:$0xff]
  %v219 = vld [vmem:[%s1 + $0x30] sm:$0xff]
  %v220 = vld [vmem:[%s1 + $0x38] sm:$0xff]
  %v221 = vld [vmem:[%s1 + $0x40] sm:$0xff]
  %v222 = vld [vmem:[%s1 + $0x90] sm:$0xff]
  %v223 = vld [vmem:[%s1 + $0x98] sm:$0xff]
  %v224 = vld [vmem:[%s1 + $0xa0] sm:$0xff]
  %v225 = vld [vmem:[%s1 + $0xa8] sm:$0xff]
  %227 = vset.pattern.permute.xlu0 0
  %228 = vperm.xlu0 %227, %v222
  %v229 = vpop.permute.xlu0 %228
  %232 = vset.pattern.permute.xlu0 0
  %233 = vperm.xlu0 %232, %v223
  %v234 = vpop.permute.xlu0 %233
  %237 = vset.pattern.permute.xlu0 0
  %238 = vperm.xlu0 %237, %v224
  %v239 = vpop.permute.xlu0 %238
  %242 = vset.pattern.permute.xlu0 0
  %243 = vperm.xlu0 %242, %v225
  %v244 = vpop.permute.xlu0 %243
  %vm246 = vcmask 261120
  %v248 = vsel %vm246, %v218, 0
  %v251 = vsel %vm246, %v219, 0
  %v254 = vsel %vm246, %v220, 0
  %v257 = vsel %vm246, %v221, 0
  %259 = vmatprep.subr.mxu0 0.0
  %260 = vmatpush1.msra.mxu0 %v214
  %261 = vmatprep.subr.mxu0 0.0
  %262 = vmatpush1.msra.mxu0 %v215
  %263 = vmatprep.subr.mxu0 0.0
  %264 = vmatpush1.msra.mxu0 %v216
  %265 = vmatprep.subr.mxu0 0.0
  %266 = vmatpush1.msra.mxu0 %v217
  %267 = vmatprep.subr.mxu0 0.0
  %268 = vmatpush1.msra.mxu0 0.0
  %269 = vmatprep.subr.mxu0 0.0
  %270 = vmatpush1.msra.mxu0 0.0
  %271 = vmatprep.subr.mxu0 0.0
  %272 = vmatpush1.msra.mxu0 0.0
  %273 = vmatprep.subr.mxu0 0.0
  %274 = vmatpush1.msra.mxu0 0.0
  %275 = vmatprep.subr.mxu0 0.0
  %276 = vmatpush1.msra.mxu0 0.0
  %277 = vmatprep.subr.mxu0 0.0
  %278 = vmatpush1.msra.mxu0 0.0
  %279 = vmatprep.subr.mxu0 0.0
  %280 = vmatpush1.msra.mxu0 0.0
  %281 = vmatprep.subr.mxu0 0.0
  %282 = vmatpush1.msra.mxu0 0.0
  %283 = vmatprep.subr.mxu0 0.0
  %284 = vmatpush1.msra.mxu0 0.0
  %285 = vmatprep.subr.mxu0 0.0
  %286 = vmatpush1.msra.mxu0 0.0
  %287 = vmatprep.subr.mxu0 0.0
  %288 = vmatpush1.msra.mxu0 0.0
  %289 = vmatprep.subr.mxu0 0.0
  %290 = vmatpush1.msra.mxu0 0.0
  %291 = vmatprep.subr.mxu0 0.0
  %292 = vmatpush1.msra.mxu0 0.0
  %293 = vmatprep.subr.mxu0 0.0
  %294 = vmatpush1.msra.mxu0 0.0
  %295 = vmatprep.subr.mxu0 0.0
  %296 = vmatpush1.msra.mxu0 0.0
  %297 = vmatprep.subr.mxu0 0.0
  %298 = vmatpush1.msra.mxu0 0.0
  %299 = vmatprep.subr.mxu0 0.0
  %300 = vmatpush1.msra.mxu0 0.0
  %301 = vmatprep.subr.mxu0 0.0
  %302 = vmatpush1.msra.mxu0 0.0
  %303 = vmatprep.subr.mxu0 0.0
  %304 = vmatpush1.msra.mxu0 0.0
  %305 = vmatprep.subr.mxu0 0.0
  %306 = vmatpush1.msra.mxu0 0.0
  %307 = vmatprep.subr.mxu0 0.0
  %308 = vmatpush1.msra.mxu0 0.0
  %309 = vmatprep.subr.mxu0 0.0
  %310 = vmatpush1.msra.mxu0 0.0
  %311 = vmatprep.subr.mxu0 0.0
  %312 = vmatpush1.msra.mxu0 0.0
  %313 = vmatprep.subr.mxu0 0.0
  %314 = vmatpush1.msra.mxu0 0.0
  %315 = vmatprep.subr.mxu0 0.0
  %316 = vmatpush1.msra.mxu0 0.0
  %317 = vmatprep.subr.mxu0 0.0
  %318 = vmatpush1.msra.mxu0 0.0
  %319 = vmatprep.subr.mxu0 0.0
  %320 = vmatpush1.msra.mxu0 0.0
  %321 = vmatprep.subr.mxu0 0.0
  %322 = vmatpush1.msra.mxu0 0.0
  %323 = vmatprep.mubr.f32.mxu0 0.0
  %324 = vmatmul.mubr.f32.gmra.mrb[0].mxu0 %v248
  %v325 = vpop.f32.mrb[0].mxu0
  %v326 = vadd.f32 %v229, %v325
  %v327 = vpop.f32.mrb[0].mxu0
  %328 = vmatprep.mubr.f32.mxu0 0.0
  %329 = vmatmul.mubr.f32.gmra.mrb[0].mxu0 %v251
  %v330 = vpop.f32.mrb[0].mxu0
  %v331 = vadd.f32 %v234, %v330
  %v332 = vpop.f32.mrb[0].mxu0
  %333 = vmatprep.mubr.f32.mxu0 0.0
  %334 = vmatmul.mubr.f32.gmra.mrb[0].mxu0 %v254
  %v335 = vpop.f32.mrb[0].mxu0
  %v336 = vadd.f32 %v239, %v335
  %v337 = vpop.f32.mrb[0].mxu0
  %338 = vmatprep.mubr.f32.mxu0 0.0
  %339 = vmatmul.mubr.f32.gmra.mrb[0].mxu0 %v257
  %v340 = vpop.f32.mrb[0].mxu0
  %v341 = vadd.f32 %v244, %v340
  %v342 = vpop.f32.mrb[0].mxu0
  %343 = vdwg.mxu0
  %v344 = vmax.f32 %v326, 0.0
  %v345 = vmax.f32 %v331, 0.0
  %v346 = vmax.f32 %v336, 0.0
  %v347 = vmax.f32 %v341, 0.0
  %v348 = vadd.f32 %v344, %v345
  %v349 = vadd.f32 %v348, %v346
  %v350 = vadd.f32 %v349, %v347
  %v351 = vrot.slane %v350, 4
  %v352 = vadd.f32 %v350, %v351
  %v353 = vrot.slane %v352, 2
  %v354 = vadd.f32 %v352, %v353
  %v355 = vrot.slane %v354, 1
  %v356 = vadd.f32 %v354, %v355
  %v357 = vmul.f32 %v356, 0.03125
  %v358 = vmul.f32 %v344, %v344
  %v359 = vmul.f32 %v345, %v345
  %v360 = vmul.f32 %v346, %v346
  %v361 = vmul.f32 %v347, %v347
  %v362 = vadd.f32 %v358, %v359
  %v363 = vadd.f32 %v362, %v360
  %v364 = vadd.f32 %v363, %v361
  %v365 = vrot.slane %v364, 4
  %v366 = vadd.f32 %v364, %v365
  %v367 = vrot.slane %v366, 2
  %v368 = vadd.f32 %v366, %v367
  %v369 = vrot.slane %v368, 1
  %v370 = vadd.f32 %v368, %v369
  %v371 = vmul.f32 %v370, 0.03125
  %v372 = vmul.f32 %v357, %v357
  %v373 = vsub.f32 %v371, %v372
  %v374 = vmax.f32 %v373, 0.0
  %v375 = vld [vmem:[%s1 + $0xd0] sm:$0xff]
  %v376 = vld [vmem:[%s1 + $0xd8] sm:$0xff]
  %v377 = vld [vmem:[%s1 + $0xe0] sm:$0xff]
  %v378 = vld [vmem:[%s1 + $0xe8] sm:$0xff]
  %v379 = vld [vmem:[%s1 + $0xf0] sm:$0xff]
  %v380 = vld [vmem:[%s1 + $0xf8] sm:$0xff]
  %v381 = vld [vmem:[%s1 + $0x100] sm:$0xff]
  %v382 = vld [vmem:[%s1 + $0x108] sm:$0xff]
  %v383 = vsub.f32 %v344, %v357
  %v384 = vsub.f32 %v345, %v357
  %v385 = vsub.f32 %v346, %v357
  %v386 = vsub.f32 %v347, %v357
  %v387 = vadd.f32 %v374, 1e-05
  %v388 = vrsqrt.pop %v387
  %v389 = vmul.f32 %v383, %v388
  %v390 = vmul.f32 %v384, %v388
  %v391 = vmul.f32 %v385, %v388
  %v392 = vmul.f32 %v386, %v388
  %394 = vset.pattern.permute.xlu0 0
  %395 = vperm.xlu0 %394, %v375
  %v396 = vpop.permute.xlu0 %395
  %399 = vset.pattern.permute.xlu0 0
  %400 = vperm.xlu0 %399, %v376
  %v401 = vpop.permute.xlu0 %400
  %404 = vset.pattern.permute.xlu0 0
  %405 = vperm.xlu0 %404, %v377
  %v406 = vpop.permute.xlu0 %405
  %409 = vset.pattern.permute.xlu0 0
  %410 = vperm.xlu0 %409, %v378
  %v411 = vpop.permute.xlu0 %410
  %v413 = vmul.f32 %v389, %v396
  %v414 = vmul.f32 %v390, %v401
  %v415 = vmul.f32 %v391, %v406
  %v416 = vmul.f32 %v392, %v411
  %418 = vset.pattern.permute.xlu0 0
  %419 = vperm.xlu0 %418, %v379
  %v420 = vpop.permute.xlu0 %419
  %423 = vset.pattern.permute.xlu0 0
  %424 = vperm.xlu0 %423, %v380
  %v425 = vpop.permute.xlu0 %424
  %428 = vset.pattern.permute.xlu0 0
  %429 = vperm.xlu0 %428, %v381
  %v430 = vpop.permute.xlu0 %429
  %433 = vset.pattern.permute.xlu0 0
  %434 = vperm.xlu0 %433, %v382
  %v435 = vpop.permute.xlu0 %434
  %v437 = vadd.f32 %v413, %v420
  %v438 = vadd.f32 %v414, %v425
  %v439 = vadd.f32 %v415, %v430
  %v440 = vadd.f32 %v416, %v435
  %v441 = vld [vmem:[%s1 + $0x48] sm:$0xff]
  %v442 = vld [vmem:[%s1 + $0x50] sm:$0xff]
  %v443 = vld [vmem:[%s1 + $0x58] sm:$0xf]
  %v444 = vld [vmem:[%s1 + $0xb0] sm:$0xff]
  %v445 = vld [vmem:[%s1 + $0xb8] sm:$0xff]
  %v446 = vld [vmem:[%s1 + $0xc0] sm:$0xf]
  %448 = vset.pattern.permute.xlu0 0
  %449 = vperm.xlu0 %448, %v444
  %v450 = vpop.permute.xlu0 %449
  %453 = vset.pattern.permute.xlu0 0
  %454 = vperm.xlu0 %453, %v445
  %v455 = vpop.permute.xlu0 %454
  %458 = vset.pattern.permute.xlu0 0
  %459 = vperm.xlu0 %458, %v446
  %v460 = vpop.permute.xlu0 %459
  %v463 = vsel %vm246, %v441, 0
  %v466 = vsel %vm246, %v442, 0
  %v469 = vsel %vm246, %v443, 0
  %471 = vmatprep.subr.mxu0 0.0
  %472 = vmatpush1.msra.mxu0 %v437
  %473 = vmatprep.subr.mxu0 0.0
  %474 = vmatpush1.msra.mxu0 %v438
  %475 = vmatprep.subr.mxu0 0.0
  %476 = vmatpush1.msra.mxu0 %v439
  %477 = vmatprep.subr.mxu0 0.0
  %478 = vmatpush1.msra.mxu0 %v440
  %479 = vmatprep.subr.mxu0 0.0
  %480 = vmatpush1.msra.mxu0 0.0
  %481 = vmatprep.subr.mxu0 0.0
  %482 = vmatpush1.msra.mxu0 0.0
  %483 = vmatprep.subr.mxu0 0.0
  %484 = vmatpush1.msra.mxu0 0.0
  %485 = vmatprep.subr.mxu0 0.0
  %486 = vmatpush1.msra.mxu0 0.0
  %487 = vmatprep.subr.mxu0 0.0
  %488 = vmatpush1.msra.mxu0 0.0
  %489 = vmatprep.subr.mxu0 0.0
  %490 = vmatpush1.msra.mxu0 0.0
  %491 = vmatprep.subr.mxu0 0.0
  %492 = vmatpush1.msra.mxu0 0.0
  %493 = vmatprep.subr.mxu0 0.0
  %494 = vmatpush1.msra.mxu0 0.0
  %495 = vmatprep.subr.mxu0 0.0
  %496 = vmatpush1.msra.mxu0 0.0
  %497 = vmatprep.subr.mxu0 0.0
  %498 = vmatpush1.msra.mxu0 0.0
  %499 = vmatprep.subr.mxu0 0.0
  %500 = vmatpush1.msra.mxu0 0.0
  %501 = vmatprep.subr.mxu0 0.0
  %502 = vmatpush1.msra.mxu0 0.0
  %503 = vmatprep.subr.mxu0 0.0
  %504 = vmatpush1.msra.mxu0 0.0
  %505 = vmatprep.subr.mxu0 0.0
  %506 = vmatpush1.msra.mxu0 0.0
  %507 = vmatprep.subr.mxu0 0.0
  %508 = vmatpush1.msra.mxu0 0.0
  %509 = vmatprep.subr.mxu0 0.0
  %510 = vmatpush1.msra.mxu0 0.0
  %511 = vmatprep.subr.mxu0 0.0
  %512 = vmatpush1.msra.mxu0 0.0
  %513 = vmatprep.subr.mxu0 0.0
  %514 = vmatpush1.msra.mxu0 0.0
  %515 = vmatprep.subr.mxu0 0.0
  %516 = vmatpush1.msra.mxu0 0.0
  %517 = vmatprep.subr.mxu0 0.0
  %518 = vmatpush1.msra.mxu0 0.0
  %519 = vmatprep.subr.mxu0 0.0
  %520 = vmatpush1.msra.mxu0 0.0
  %521 = vmatprep.subr.mxu0 0.0
  %522 = vmatpush1.msra.mxu0 0.0
  %523 = vmatprep.subr.mxu0 0.0
  %524 = vmatpush1.msra.mxu0 0.0
  %525 = vmatprep.subr.mxu0 0.0
  %526 = vmatpush1.msra.mxu0 0.0
  %527 = vmatprep.subr.mxu0 0.0
  %528 = vmatpush1.msra.mxu0 0.0
  %529 = vmatprep.subr.mxu0 0.0
  %530 = vmatpush1.msra.mxu0 0.0
  %531 = vmatprep.subr.mxu0 0.0
  %532 = vmatpush1.msra.mxu0 0.0
  %533 = vmatprep.subr.mxu0 0.0
  %534 = vmatpush1.msra.mxu0 0.0
  %535 = vmatprep.mubr.f32.mxu0 0.0
  %536 = vmatmul.mubr.f32.gmra.mrb[0].mxu0 %v463
  %v537 = vpop.f32.mrb[0].mxu0
  %v538 = vadd.f32 %v450, %v537
  %v539 = vpop.f32.mrb[0].mxu0
  %540 = vmatprep.mubr.f32.mxu0 0.0
  %541 = vmatmul.mubr.f32.gmra.mrb[0].mxu0 %v466
  %v542 = vpop.f32.mrb[0].mxu0
  %v543 = vadd.f32 %v455, %v542
  %v544 = vpop.f32.mrb[0].mxu0
  %545 = vmatprep.mubr.f32.mxu0 0.0
  %546 = vmatmul.mubr.f32.gmra.mrb[0].mxu0 %v469
  %v547 = vpop.f32.mrb[0].mxu0
  %v548 = vadd.f32 %v460, %v547
  %v549 = vpop.f32.mrb[0].mxu0
  %550 = vdwg.mxu0
  %v551 = vmax.f32 %v538, 0.0
  %v552 = vmax.f32 %v543, 0.0
  %v553 = vmax.f32 %v548, 0.0
  %v554 = vld [vmem:[%s1 + $0x60] sm:$0xff]
  %v555 = vld [vmem:[%s1 + $0x68] sm:$0xff]
  %v556 = vld [vmem:[%s1 + $0xc8] sm:$0x1]
  %558 = vset.pattern.permute.xlu0 0
  %559 = vperm.xlu0 %558, %v554
  %v560 = vpop.permute.xlu0 %559
  %563 = vset.pattern.permute.xlu0 0
  %564 = vperm.xlu0 %563, %v555
  %v565 = vpop.permute.xlu0 %564
  %vm570 = vcmask 1043456
  %v571 = vrot.slane %v551, 4
  %v572 = vrot.slane %v552, 4
  %v573 = vsel %vm570, %v571, %v572
  %v574 = vrot.slane %v553, 4
  %v575 = vsel %vm570, %v572, %v574
  %v578 = vmul.f32 %v560, %v573
  %v579 = vmul.f32 %v565, %v575
  %v580 = vadd.f32 %v578, %v579
  %v581 = vrot.slane %v580, 4
  %v582 = vadd.f32 %v580, %v581
  %v583 = vrot.slane %v582, 2
  %v584 = vadd.f32 %v582, %v583
  %v585 = vrot.slane %v584, 1
  %v586 = vadd.f32 %v584, %v585
  %588 = vset.pattern.permute.xlu0 0
  %589 = vperm.xlu0 %588, %v556
  %v590 = vpop.permute.xlu0 %589
  %v592 = vadd.f32 %v586, %v590
  %v593 = vtanh.pop %v538
  %v594 = vlaneseq
  %v595 = vshrl.u32 %v594, 7
  %vm596 = vcmp.eq.s32.totalorder %v595, 3
  %v597 = vsel %vm596, 0.157, 1.0
  %v598 = vsub.f32 0.0, %v597
  %v599 = vmax.f32 %v598, %v593
  %v600 = vmin.f32 %v597, %v599
  %v601 = vld [vmem:[%s1 + $0x110] sm:$0xf]
  %v602 = vmul.f32 %v601, 0.9
  %v603 = vmul.f32 %v600, 0.1
  %605 = vset.pattern.permute.xlu0 0
  %606 = vperm.xlu0 %605, %v602
  %v607 = vpop.permute.xlu0 %606
  %v609 = vadd.f32 %v607, %v603
  %vm610 = vcmp.lt.f32.partialorder %v183, 5.0
  %vm611 = vcmp.eq.s32.totalorder %v595, 2
  %v612 = vsel %vm610, 1, 0
  %v613 = vlaneseq
  %v614 = vshrl.u32 %v613, 7
  %v615 = vsub.s32 0, %v614
  %v616 = vrot.slane %v612, %v615
  %vm617 = vcmp.eq.s32.totalorder %v616, 1
  %vm618 = vmand %vm617, %vm611
  %v619 = vmax.f32 %v609, -0.5
  %v620 = vmin.f32 %v619, 0.5
  %v621 = vsel %vm618, %v620, %v609
  %622 = vst [vmem:[%s2] sm:$0xf] %v621
  %623 = vst [vmem:[%s2 + $0x4] sm:$0xf] %v538
  %624 = vst [vmem:[%s2 + $0x8] sm:$0x1] %v592
  // Predicated region
  $region10: #{execution_policy_forward.1} parent=0 // pred_check
    _
  $region11: #{execution_policy_forward.1} parent=0 // pred_check_branch
    %626 = sbr.rel (0) target = $region13
  $region12: #{execution_policy_forward.1} parent=0 // pred_region
    _
  $region13: #{execution_policy_forward.1} parent=0 // pred_fallthru
    _
  // Predicated region
  $region14: #{execution_policy_forward.1} parent=0 // pred_check
    _
  $region15: #{execution_policy_forward.1} parent=0 // pred_check_branch
    %628 = sbr.rel (0) target = $region17
  $region16: #{execution_policy_forward.1} parent=0 // pred_region
    _
  $region17: #{execution_policy_forward.1} parent=0 // pred_fallthru
    _

</llo_original>
